<compile_context>
chip_gen: v6e
topology: v6e:2x2x1
jax: 0.10.0
libtpu: 0.0.40
codegen_flags: <defaults>
</compile_context>

<pallas_src>
import functools

import jax
import jax.numpy as jnp
from jax import lax
from jax.experimental import pallas as pl
from jax.experimental.pallas import tpu as pltpu


def _round_up(x, m):
    return (x + m - 1) // m * m


def _vmem_capacity_bytes():
    try:
        cap = int(pltpu.get_tpu_info().vmem_capacity_bytes)
        if cap > 0:
            return cap
    except Exception:
        pass
    return 64 * 1024 * 1024  # conservative fallback (v7x per-TensorCore VMEM)


def _resident_vmem_usage(tb, C, D, t_bytes, o_bytes):
    d_lanes = _round_up(D, 128)
    return (_round_up(C, 8) * d_lanes * t_bytes   # table, single-buffered (Buffered(1))
            + 2 * tb * d_lanes * o_bytes          # output double buffer
            + 2 * tb * 128 * 4                    # labels double buffer (lane-padded)
            + tb * _round_up(C, 128) * 4          # one-hot temp (f32)
            + tb * d_lanes * 4)                   # f32 matmul result before cast


def _chunked_vmem_usage(tb, ck, D, t_bytes, o_bytes):
    d_lanes = _round_up(D, 128)
    return (2 * ck * d_lanes * t_bytes            # table chunk double buffer
            + 2 * tb * d_lanes * o_bytes          # output double buffer
            + tb * d_lanes * 4                    # f32 accumulator scratch
            + 2 * tb * 128 * 4                    # labels double buffer
            + tb * _round_up(ck, 128) * 4         # one-hot temp
            + tb * d_lanes * 4)                   # dot result temp


def _embed_resident_kernel(labels_ref, table_ref, out_ref):
    # labels_ref: (TB, 1) int32; table_ref: (C, D) VMEM-resident; out_ref: (TB, D).
    labels = labels_ref[...]
    tb = labels.shape[0]
    c = table_ref.shape[0]
    # One-hot built on the VPU, gather executed on the MXU.  HIGHEST precision
    # keeps the f32 matmul bit-exact for 0/1 selectors.
    class_ids = jax.lax.broadcasted_iota(jnp.int32, (tb, c), 1)
    one_hot = (class_ids == labels).astype(table_ref.dtype)
    out_ref[...] = jnp.dot(
        one_hot, table_ref[...],
        preferred_element_type=jnp.float32,
        precision=lax.Precision.HIGHEST,
    ).astype(out_ref.dtype)


def _embed_chunked_kernel(labels_ref, table_ref, out_ref, acc_ref, *, num_classes):
    # Grid: (batch tiles, class chunks); class chunks stream the table from HBM.
    k = pl.program_id(1)

    @pl.when(k == 0)
    def _init():
        acc_ref[...] = jnp.zeros_like(acc_ref)

    labels = labels_ref[...]                       # (TB, 1) int32
    tb = labels.shape[0]
    ck = table_ref.shape[0]

    class_ids = jax.lax.broadcasted_iota(jnp.int32, (tb, ck), 1) + k * ck
    one_hot = (class_ids == labels).astype(table_ref.dtype)

    tbl = table_ref[...]
    if num_classes % ck != 0:
        # Last chunk reads past the end of the table (contents undefined);
        # zero those rows so 0 * garbage cannot inject NaN/Inf.
        row_ids = jax.lax.broadcasted_iota(jnp.int32, (ck, 1), 0) + k * ck
        tbl = jnp.where(row_ids < num_classes, tbl, jnp.zeros_like(tbl))

    acc_ref[...] += jnp.dot(
        one_hot, tbl,
        preferred_element_type=jnp.float32,
        precision=lax.Precision.HIGHEST,
    )

    @pl.when(k == pl.num_programs(1) - 1)
    def _finalize():
        out_ref[...] = acc_ref[...].astype(out_ref.dtype)


def label_embedding(y, emb_table, *, tb=None, class_chunk=512, force_chunked=False):
    """Equivalent of LabelEmbedding.forward: emb_table[y].

    NOTE: out-of-range labels are clamped to [0, num_classes - 1]; PyTorch's
    nn.Embedding raises instead (documented divergence).
    """
    (B,) = y.shape
    C, D = emb_table.shape
    tdtype = emb_table.dtype
    t_bytes = tdtype.itemsize
    o_bytes = t_bytes

    vmem_cap = _vmem_capacity_bytes()
    soft_cap = (vmem_cap * 3) // 4  # headroom; per-TensorCore budget on v7x

    # Batch tile: multiple of 8 sublanes; default up to 512 rows (also a
    # multiple of 256 for full v6e MXU tiles) to amortize the ~0.35us/step
    # pipeline overhead of this store-bound kernel, shrunk to fit VMEM.
    if tb is None:
        tb = min(_round_up(max(B, 1), 8), 512)
    tb = max(8, _round_up(tb, 8))

    use_resident = (not force_chunked) and (
        _resident_vmem_usage(8, C, D, t_bytes, o_bytes) <= soft_cap)

    if use_resident:
        while tb > 8 and _resident_vmem_usage(tb, C, D, t_bytes, o_bytes) > soft_cap:
            tb = max(8, _round_up(tb // 2, 8))
        usage = _resident_vmem_usage(tb, C, D, t_bytes, o_bytes)
        ck = None
    else:
        ck = max(8, min(_round_up(class_chunk, 8), _round_up(C, 8)))
        while tb > 8 and _chunked_vmem_usage(tb, ck, D, t_bytes, o_bytes) > soft_cap:
            tb = max(8, _round_up(tb // 2, 8))
        usage = _chunked_vmem_usage(tb, ck, D, t_bytes, o_bytes)

    # Explicit scoped-VMEM limit derived from the computed budget (+ slack).
    vmem_limit = int(min(usage + (16 << 20), (vmem_cap * 9) // 10))
    vmem_limit = max(vmem_limit, usage + (1 << 20))

    b_pad = _round_up(B, tb)

    # Label prep: clamp (see docstring) and pad batch only when misaligned.
    labels = jnp.clip(y.astype(jnp.int32), 0, C - 1)
    if b_pad != B:
        labels = jnp.pad(labels, (0, b_pad - B))
    labels = labels.reshape(b_pad, 1)

    grid_batch = b_pad // tb
    out_shape = jax.ShapeDtypeStruct((b_pad, D), tdtype)

    if use_resident:
        out = pl.pallas_call(
            _embed_resident_kernel,
            out_shape=out_shape,
            grid_spec=pltpu.PrefetchScalarGridSpec(
                num_scalar_prefetch=0,
                grid=(grid_batch,),
                in_specs=[
                    # Per-step label tile: (TB, 1), TB a multiple of 8.
                    pl.BlockSpec((tb, 1), lambda i: (i, 0)),
                    # Full-extent table, constant index -> DMA'd once and kept
                    # in VMEM.  Buffered(1): a block that never changes does
                    # not need the default 2x double-buffer.
                    pl.BlockSpec((C, D), lambda i: (0, 0),
                                 pipeline_mode=pl.Buffered(1)),
                ],
                out_specs=pl.BlockSpec((tb, D), lambda i: (i, 0)),
            ),
            compiler_params=pltpu.CompilerParams(
                # Batch rows are independent -> v7x's two TensorCores split
                # the batch axis (no-op on single-TC v5e/v6e).
                dimension_semantics=("parallel",),
                vmem_limit_bytes=vmem_limit,
            ),
        )(labels, emb_table)
    else:
        nchunks = (C + ck - 1) // ck
        kernel = functools.partial(_embed_chunked_kernel, num_classes=C)
        out = pl.pallas_call(
            kernel,
            out_shape=out_shape,
            grid_spec=pltpu.PrefetchScalarGridSpec(
                num_scalar_prefetch=0,
                grid=(grid_batch, nchunks),
                in_specs=[
                    pl.BlockSpec((tb, 1), lambda i, k: (i, 0)),
                    # Stream (ck, D) table chunks from HBM; default double
                    # buffering overlaps the next chunk's DMA with the matmul.
                    pl.BlockSpec((ck, D), lambda i, k: (k, 0)),
                ],
                out_specs=pl.BlockSpec((tb, D), lambda i, k: (i, 0)),
                scratch_shapes=[pltpu.VMEM((tb, D), jnp.float32)],
            ),
            compiler_params=pltpu.CompilerParams(
                dimension_semantics=("parallel", "arbitrary"),
                vmem_limit_bytes=vmem_limit,
            ),
        )(labels, emb_table)

    if b_pad != B:
        out = out[:B]
    return out


if __name__ == "__main__":
    num_classes = 16
    embedding_dim = 128
    batch = 8

    key = jax.random.PRNGKey(0)
    k_emb, k_y = jax.random.split(key)

    # nn.Embedding default init is N(0, 1).
    emb_table = jax.random.normal(
        k_emb, (num_classes, embedding_dim), dtype=jnp.float32)
    y = jax.random.randint(k_y, (batch,), 0, num_classes, dtype=jnp.int32)

    ref = emb_table[y]

    # 1) Main path: VMEM-resident table, lane-dense (TB, D) stores.
    out = jax.block_until_ready(label_embedding(y, emb_table))
    assert out.shape == (batch, embedding_dim), out.shape
    assert out.dtype == emb_table.dtype
    # An embedding gather must be bit-exact: one-hot selectors are exactly 0/1
    # and the dot runs at HIGHEST precision.
    assert jnp.array_equal(out, ref), "resident path mismatch vs reference gather"

    # 2) Fallback path for tables too large for VMEM: class-chunked streaming
    #    with an accumulator (forced here at a tiny chunk size to exercise it).
    out_chunked = jax.block_until_ready(
        label_embedding(y, emb_table, force_chunked=True, class_chunk=8))
    assert jnp.array_equal(out_chunked, ref), "chunked path mismatch vs reference gather"

    print("KERNEL_OK")
</pallas_src>

<mosaic_0001>
module attributes {stable_mosaic.version = 11 : i64} {
  func.func @_embed_resident_kernel(%arg0: i32, %arg1: memref<8x1xi32, #tpu.memory_space<vmem>>, %arg2: memref<16x128xf32, #tpu.memory_space<vmem>>, %arg3: memref<8x128xf32, #tpu.memory_space<vmem>>) attributes {dimension_semantics = [#tpu.dimension_semantics<parallel>], iteration_bounds = array<i64: 1>, scalar_prefetch = 0 : i64, scratch_operands = 0 : i64, tpu.core_type = #tpu.core_type<tc>, window_params = [{transform_indices = @transform_0, window_bounds = array<i64: 8, 1>}, {pipeline_mode = #tpu.pipeline_mode<synchronous>, transform_indices = @transform_1, window_bounds = array<i64: 16, 128>}, {transform_indices = @transform_2, window_bounds = array<i64: 8, 128>}]} {
    %c0 = arith.constant 0 : index
    %c0_0 = arith.constant 0 : index
    %0 = vector.load %arg1[%c0, %c0_0] : memref<8x1xi32, #tpu.memory_space<vmem>>, vector<8x1xi32>
    %1 = tpu.iota {dimensions = array<i32: 1>} : vector<8x16xi32>
    %2 = vector.broadcast %0 : vector<8x1xi32> to vector<8x16xi32>
    %3 = arith.cmpi eq, %1, %2 : vector<8x16xi32>
    %4 = arith.extui %3 : vector<8x16xi1> to vector<8x16xi32>
    %5 = arith.sitofp %4 : vector<8x16xi32> to vector<8x16xf32>
    %c0_1 = arith.constant 0 : index
    %c0_2 = arith.constant 0 : index
    %6 = vector.load %arg2[%c0_1, %c0_2] : memref<16x128xf32, #tpu.memory_space<vmem>>, vector<16x128xf32>
    %cst = arith.constant dense<0.000000e+00> : vector<8x128xf32>
    %7 = tpu.matmul %5, %6, %cst {dimension_numbers = #tpu.dot_dimension_numbers<[1], [0], [0], [1], [0, 0, 1, 1], [], []>, precision = #tpu.contract_precision<fp32>} : vector<8x16xf32>, vector<16x128xf32>, vector<8x128xf32> -> vector<8x128xf32>
    %c0_3 = arith.constant 0 : index
    %c0_4 = arith.constant 0 : index
    %8 = vector.load %arg3[%c0_3, %c0_4] : memref<8x128xf32, #tpu.memory_space<vmem>>, vector<8x128xf32>
    tpu.vector_store %arg3[%c0_3, %c0_4], %7 {strides = array<i32>} : memref<8x128xf32, #tpu.memory_space<vmem>>, vector<8x128xf32>,
    return
  }
  func.func @transform_0(%arg0: i32) -> (i32, i32) {
    %c0_i32 = arith.constant 0 : i32
    %c0_i32_0 = arith.constant 0 : i32
    return %arg0, %c0_i32 : i32, i32
  }
  func.func @transform_1(%arg0: i32) -> (i32, i32) {
    %c0_i32 = arith.constant 0 : i32
    %c0_i32_0 = arith.constant 0 : i32
    %c0_i32_1 = arith.constant 0 : i32
    return %c0_i32, %c0_i32_0 : i32, i32
  }
  func.func @transform_2(%arg0: i32) -> (i32, i32) {
    %c0_i32 = arith.constant 0 : i32
    %c0_i32_0 = arith.constant 0 : i32
    return %arg0, %c0_i32 : i32, i32
  }
}

</mosaic_0001>

<llo_original>
// kernel: tpu_custom_call.1
$region0: #{tpu_custom_call.1}
  #allocation0 [shape = 'u32[]', space=smem, size = 0x4, offset = 0x4, fixed_abs, tag = 'smem constant byte address 0x4 - core index']
  #allocation1 [shape = 'u32[144,128]{1,0:T(1,128)}', space=vmem, size = 0x12000, scoped, tag = 'internal scratch']
  %s0 = inlined_call_operand.vmem [shape: s32[8,1], index: 0, kind: input, shape index: {}]
  %s1 = inlined_call_operand.hbm [shape: f32[16,128], index: 1, kind: input, shape index: {}]
  %s2 = inlined_call_operand.hbm [shape: f32[8,128], index: 2, kind: output, shape index: {}]
  %s3 = sld [smem:[#allocation0]]
  $region22: #{tpu_custom_call.1} parent=0
    _
  %s5 = ssub.s32 1, %s3
  %s6 = scalar_select 0, %s5, %s3
  $region1: #{tpu_custom_call.1} parent=0
    #allocation2 [shape = 'u8[8192]{0}', space=vmem, size = 0x2000, scoped, tag = 'input window, operand 1, single buffered']
    #allocation3 [shape = 's32[1]{0}', space=sflag, size = 0x4, scoped, tag = 'scoped memory for tpu_custom_call.1']
    #allocation4 [shape = 's32[1]{0}', space=sflag, size = 0x4, scoped, tag = 'scoped memory for tpu_custom_call.1']
    #allocation5 [shape = 'u8[4096]{0}', space=vmem, size = 0x1000, scoped, tag = 'output window, operand 0, single buffered']
    %7 = vsyncpa [#allocation3], 0
    %8 = vsyncpa [#allocation4], 0
    // Predicated region
    $region2: #{tpu_custom_call.1} parent=1 // pred_check
      _
    $region3: #{tpu_custom_call.1} parent=1 // pred_check_branch
      %10 = sbr.rel (0) target = $region5
    $region4: #{tpu_custom_call.1} parent=1 // pred_region
      _
    $region5: #{tpu_custom_call.1} parent=1 // pred_fallthru
      _
    // Predicated region
    $region6: #{tpu_custom_call.1} parent=1 // pred_check
      _
    $region7: #{tpu_custom_call.1} parent=1 // pred_check_branch
      %12 = sbr.rel (0) target = $region9
    $region8: #{tpu_custom_call.1} parent=1 // pred_region
      %s14 = ssub.s32 256, 256
      %15 = vsyncadd [#allocation3], %s14
      %s16 = sshll.u32 [#allocation2], 4
      %s17 = int_to_ptr.vmem [resolvable:$true] %s16
      %22 = dma.hbm_to_vmem [thread:$0]  %s1, 256, %s17, [#allocation3], 128, 128, 8
    $region9: #{tpu_custom_call.1} parent=1 // pred_fallthru
      _
    // Predicated region
    $region10: #{tpu_custom_call.1} parent=1 // pred_check
      _
    $region11: #{tpu_custom_call.1} parent=1 // pred_check_branch
      %24 = sbr.rel (0) target = $region13
    $region12: #{tpu_custom_call.1} parent=1 // pred_region
      %25 = dma.done [#allocation3], 256
    $region13: #{tpu_custom_call.1} parent=1 // pred_fallthru
      _
    %v26 = vld [vmem:[%s0] sm:$0xff]
    %v27 = vlaneseq
    %v28 = vand.u32 %v27, 127
    %29 = vset.pattern.permute.xlu0 0
    %30 = vperm.xlu0 %29, %v26
    %v31 = vpop.permute.xlu0 %30
    %vm32 = vcmp.eq.s32.totalorder %v28, %v31
    %v33 = vsel %vm32, 1, 0
    %v34 = vcvt.s32.f32 %v33
    %v35 = vld [vmem:[#allocation2] sm:$0xff]
    %v36 = vld [vmem:[#allocation2 + $0x8] sm:$0xff]
    %vm37 = vcmask 130048
    %v39 = vsel %vm37, %v34, 0
    %41 = vmatprep.subr.mxu0 0.0
    %42 = vmatpush1.msra.mxu0 0.0
    %43 = vmatprep.subr.mxu0 0.0
    %44 = vmatpush1.msra.mxu0 0.0
    %45 = vmatprep.subr.mxu0 0.0
    %46 = vmatpush1.msra.mxu0 0.0
    %47 = vmatprep.subr.mxu0 0.0
    %48 = vmatpush1.msra.mxu0 0.0
    %49 = vmatprep.subr.mxu0 0.0
    %50 = vmatpush1.msra.mxu0 0.0
    %51 = vmatprep.subr.mxu0 0.0
    %52 = vmatpush1.msra.mxu0 0.0
    %53 = vmatprep.subr.mxu0 0.0
    %54 = vmatpush1.msra.mxu0 0.0
    %55 = vmatprep.subr.mxu0 0.0
    %56 = vmatpush1.msra.mxu0 0.0
    %57 = vmatprep.subr.mxu0 0.0
    %58 = vmatpush1.msra.mxu0 0.0
    %59 = vmatprep.subr.mxu0 0.0
    %60 = vmatpush1.msra.mxu0 0.0
    %61 = vmatprep.subr.mxu0 0.0
    %62 = vmatpush1.msra.mxu0 0.0
    %63 = vmatprep.subr.mxu0 0.0
    %64 = vmatpush1.msra.mxu0 0.0
    %65 = vmatprep.subr.mxu0 0.0
    %66 = vmatpush1.msra.mxu0 0.0
    %67 = vmatprep.subr.mxu0 0.0
    %68 = vmatpush1.msra.mxu0 0.0
    %69 = vmatprep.subr.mxu0 0.0
    %v70 = vand.u32 %v36, 4294901760
    %71 = vmatpush1.msra.mxu0 %v70
    %72 = vmatprep.subr.mxu0 0.0
    %v73 = vand.u32 %v35, 4294901760
    %74 = vmatpush1.msra.mxu0 %v73
    %75 = vmatprep.subr.mxu0 0.0
    %76 = vmatpush2.msra.mxu0 0.0
    %77 = vmatprep.subr.mxu0 0.0
    %78 = vmatpush2.msra.mxu0 0.0
    %79 = vmatprep.subr.mxu0 0.0
    %80 = vmatpush2.msra.mxu0 0.0
    %81 = vmatprep.subr.mxu0 0.0
    %82 = vmatpush2.msra.mxu0 0.0
    %83 = vmatprep.subr.mxu0 0.0
    %84 = vmatpush2.msra.mxu0 0.0
    %85 = vmatprep.subr.mxu0 0.0
    %86 = vmatpush2.msra.mxu0 0.0
    %87 = vmatprep.subr.mxu0 0.0
    %88 = vmatpush2.msra.mxu0 0.0
    %89 = vmatprep.subr.mxu0 0.0
    %90 = vmatpush2.msra.mxu0 0.0
    %91 = vmatprep.subr.mxu0 0.0
    %92 = vmatpush2.msra.mxu0 0.0
    %93 = vmatprep.subr.mxu0 0.0
    %94 = vmatpush2.msra.mxu0 0.0
    %95 = vmatprep.subr.mxu0 0.0
    %96 = vmatpush2.msra.mxu0 0.0
    %97 = vmatprep.subr.mxu0 0.0
    %98 = vmatpush2.msra.mxu0 0.0
    %99 = vmatprep.subr.mxu0 0.0
    %100 = vmatpush2.msra.mxu0 0.0
    %101 = vmatprep.subr.mxu0 0.0
    %102 = vmatpush2.msra.mxu0 0.0
    %103 = vmatprep.subr.mxu0 0.0
    %104 = vmatpush2.msra.mxu0 0.0
    %105 = vmatprep.subr.mxu0 0.0
    %106 = vmatpush2.msra.mxu0 0.0
    %107 = vmatprep.mubr.f32.mxu0 0.0
    %v108 = vand.u32 %v39, 4294901760
    %v109 = vsub.f32 %v39, %v108
    %v110 = vand.u32 %v109, 4294901760
    %v111 = vsub.f32 %v109, %v110
    %v112 = vand.u32 %v111, 4294901760
    %113 = vmatmul.mubr.f32.gmra.mxu0 %v112
    %v114 = vpop.f32.mrf.mxu0
    %v115 = vadd.f32 0.0, %v114
    %v116 = vpop.f32.mrf.mxu0
    %117 = vdwg.mxu0
    %118 = vmatprep.subr.mxu0 0.0
    %119 = vmatpush1.msra.mxu0 0.0
    %120 = vmatprep.subr.mxu0 0.0
    %121 = vmatpush1.msra.mxu0 0.0
    %122 = vmatprep.subr.mxu0 0.0
    %123 = vmatpush1.msra.mxu0 0.0
    %124 = vmatprep.subr.mxu0 0.0
    %125 = vmatpush1.msra.mxu0 0.0
    %126 = vmatprep.subr.mxu0 0.0
    %127 = vmatpush1.msra.mxu0 0.0
    %128 = vmatprep.subr.mxu0 0.0
    %129 = vmatpush1.msra.mxu0 0.0
    %130 = vmatprep.subr.mxu0 0.0
    %131 = vmatpush1.msra.mxu0 0.0
    %132 = vmatprep.subr.mxu0 0.0
    %133 = vmatpush1.msra.mxu0 0.0
    %134 = vmatprep.subr.mxu0 0.0
    %135 = vmatpush1.msra.mxu0 0.0
    %136 = vmatprep.subr.mxu0 0.0
    %137 = vmatpush1.msra.mxu0 0.0
    %138 = vmatprep.subr.mxu0 0.0
    %139 = vmatpush1.msra.mxu0 0.0
    %140 = vmatprep.subr.mxu0 0.0
    %141 = vmatpush1.msra.mxu0 0.0
    %142 = vmatprep.subr.mxu0 0.0
    %143 = vmatpush1.msra.mxu0 0.0
    %144 = vmatprep.subr.mxu0 0.0
    %145 = vmatpush1.msra.mxu0 0.0
    %146 = vmatprep.subr.mxu0 0.0
    %v147 = vand.u32 %v36, 4294901760
    %v148 = vsub.f32 %v36, %v147
    %v149 = vand.u32 %v148, 4294901760
    %v150 = vsub.f32 %v148, %v149
    %v151 = vand.u32 %v150, 4294901760
    %152 = vmatpush1.msra.mxu0 %v151
    %153 = vmatprep.subr.mxu0 0.0
    %v154 = vand.u32 %v35, 4294901760
    %v155 = vsub.f32 %v35, %v154
    %v156 = vand.u32 %v155, 4294901760
    %v157 = vsub.f32 %v155, %v156
    %v158 = vand.u32 %v157, 4294901760
    %159 = vmatpush1.msra.mxu0 %v158
    %160 = vmatprep.subr.mxu0 0.0
    %161 = vmatpush2.msra.mxu0 0.0
    %162 = vmatprep.subr.mxu0 0.0
    %163 = vmatpush2.msra.mxu0 0.0
    %164 = vmatprep.subr.mxu0 0.0
    %165 = vmatpush2.msra.mxu0 0.0
    %166 = vmatprep.subr.mxu0 0.0
    %167 = vmatpush2.msra.mxu0 0.0
    %168 = vmatprep.subr.mxu0 0.0
    %169 = vmatpush2.msra.mxu0 0.0
    %170 = vmatprep.subr.mxu0 0.0
    %171 = vmatpush2.msra.mxu0 0.0
    %172 = vmatprep.subr.mxu0 0.0
    %173 = vmatpush2.msra.mxu0 0.0
    %174 = vmatprep.subr.mxu0 0.0
    %175 = vmatpush2.msra.mxu0 0.0
    %176 = vmatprep.subr.mxu0 0.0
    %177 = vmatpush2.msra.mxu0 0.0
    %178 = vmatprep.subr.mxu0 0.0
    %179 = vmatpush2.msra.mxu0 0.0
    %180 = vmatprep.subr.mxu0 0.0
    %181 = vmatpush2.msra.mxu0 0.0
    %182 = vmatprep.subr.mxu0 0.0
    %183 = vmatpush2.msra.mxu0 0.0
    %184 = vmatprep.subr.mxu0 0.0
    %185 = vmatpush2.msra.mxu0 0.0
    %186 = vmatprep.subr.mxu0 0.0
    %187 = vmatpush2.msra.mxu0 0.0
    %188 = vmatprep.subr.mxu0 0.0
    %189 = vmatpush2.msra.mxu0 0.0
    %190 = vmatprep.subr.mxu0 0.0
    %191 = vmatpush2.msra.mxu0 0.0
    %192 = vmatprep.mubr.f32.mxu0 0.0
    %v193 = vand.u32 %v39, 4294901760
    %194 = vmatmul.mubr.f32.gmra.mxu0 %v193
    %v195 = vpop.f32.mrf.mxu0
    %v196 = vadd.f32 %v115, %v195
    %v197 = vpop.f32.mrf.mxu0
    %198 = vdwg.mxu0
    %199 = vmatprep.subr.mxu0 0.0
    %200 = vmatpush1.msra.mxu0 0.0
    %201 = vmatprep.subr.mxu0 0.0
    %202 = vmatpush1.msra.mxu0 0.0
    %203 = vmatprep.subr.mxu0 0.0
    %204 = vmatpush1.msra.mxu0 0.0
    %205 = vmatprep.subr.mxu0 0.0
    %206 = vmatpush1.msra.mxu0 0.0
    %207 = vmatprep.subr.mxu0 0.0
    %208 = vmatpush1.msra.mxu0 0.0
    %209 = vmatprep.subr.mxu0 0.0
    %210 = vmatpush1.msra.mxu0 0.0
    %211 = vmatprep.subr.mxu0 0.0
    %212 = vmatpush1.msra.mxu0 0.0
    %213 = vmatprep.subr.mxu0 0.0
    %214 = vmatpush1.msra.mxu0 0.0
    %215 = vmatprep.subr.mxu0 0.0
    %216 = vmatpush1.msra.mxu0 0.0
    %217 = vmatprep.subr.mxu0 0.0
    %218 = vmatpush1.msra.mxu0 0.0
    %219 = vmatprep.subr.mxu0 0.0
    %220 = vmatpush1.msra.mxu0 0.0
    %221 = vmatprep.subr.mxu0 0.0
    %222 = vmatpush1.msra.mxu0 0.0
    %223 = vmatprep.subr.mxu0 0.0
    %224 = vmatpush1.msra.mxu0 0.0
    %225 = vmatprep.subr.mxu0 0.0
    %226 = vmatpush1.msra.mxu0 0.0
    %227 = vmatprep.subr.mxu0 0.0
    %v228 = vand.u32 %v36, 4294901760
    %v229 = vsub.f32 %v36, %v228
    %230 = vmatpush1.msra.mxu0 %v229
    %231 = vmatprep.subr.mxu0 0.0
    %v232 = vand.u32 %v35, 4294901760
    %v233 = vsub.f32 %v35, %v232
    %234 = vmatpush1.msra.mxu0 %v233
    %235 = vmatprep.subr.mxu0 0.0
    %236 = vmatpush2.msra.mxu0 0.0
    %237 = vmatprep.subr.mxu0 0.0
    %238 = vmatpush2.msra.mxu0 0.0
    %239 = vmatprep.subr.mxu0 0.0
    %240 = vmatpush2.msra.mxu0 0.0
    %241 = vmatprep.subr.mxu0 0.0
    %242 = vmatpush2.msra.mxu0 0.0
    %243 = vmatprep.subr.mxu0 0.0
    %244 = vmatpush2.msra.mxu0 0.0
    %245 = vmatprep.subr.mxu0 0.0
    %246 = vmatpush2.msra.mxu0 0.0
    %247 = vmatprep.subr.mxu0 0.0
    %248 = vmatpush2.msra.mxu0 0.0
    %249 = vmatprep.subr.mxu0 0.0
    %250 = vmatpush2.msra.mxu0 0.0
    %251 = vmatprep.subr.mxu0 0.0
    %252 = vmatpush2.msra.mxu0 0.0
    %253 = vmatprep.subr.mxu0 0.0
    %254 = vmatpush2.msra.mxu0 0.0
    %255 = vmatprep.subr.mxu0 0.0
    %256 = vmatpush2.msra.mxu0 0.0
    %257 = vmatprep.subr.mxu0 0.0
    %258 = vmatpush2.msra.mxu0 0.0
    %259 = vmatprep.subr.mxu0 0.0
    %260 = vmatpush2.msra.mxu0 0.0
    %261 = vmatprep.subr.mxu0 0.0
    %262 = vmatpush2.msra.mxu0 0.0
    %263 = vmatprep.subr.mxu0 0.0
    %264 = vmatpush2.msra.mxu0 0.0
    %265 = vmatprep.subr.mxu0 0.0
    %266 = vmatpush2.msra.mxu0 0.0
    %267 = vmatprep.mubr.f32.mxu0 0.0
    %v268 = vand.u32 %v39, 4294901760
    %v269 = vsub.f32 %v39, %v268
    %270 = vmatmul.mubr.f32.gmra.mxu0 %v269
    %v271 = vpop.f32.mrf.mxu0
    %v272 = vadd.f32 %v196, %v271
    %v273 = vpop.f32.mrf.mxu0
    %274 = vdwg.mxu0
    %275 = vmatprep.subr.mxu0 0.0
    %276 = vmatpush1.msra.mxu0 0.0
    %277 = vmatprep.subr.mxu0 0.0
    %278 = vmatpush1.msra.mxu0 0.0
    %279 = vmatprep.subr.mxu0 0.0
    %280 = vmatpush1.msra.mxu0 0.0
    %281 = vmatprep.subr.mxu0 0.0
    %282 = vmatpush1.msra.mxu0 0.0
    %283 = vmatprep.subr.mxu0 0.0
    %284 = vmatpush1.msra.mxu0 0.0
    %285 = vmatprep.subr.mxu0 0.0
    %286 = vmatpush1.msra.mxu0 0.0
    %287 = vmatprep.subr.mxu0 0.0
    %288 = vmatpush1.msra.mxu0 0.0
    %289 = vmatprep.subr.mxu0 0.0
    %290 = vmatpush1.msra.mxu0 0.0
    %291 = vmatprep.subr.mxu0 0.0
    %292 = vmatpush1.msra.mxu0 0.0
    %293 = vmatprep.subr.mxu0 0.0
    %294 = vmatpush1.msra.mxu0 0.0
    %295 = vmatprep.subr.mxu0 0.0
    %296 = vmatpush1.msra.mxu0 0.0
    %297 = vmatprep.subr.mxu0 0.0
    %298 = vmatpush1.msra.mxu0 0.0
    %299 = vmatprep.subr.mxu0 0.0
    %300 = vmatpush1.msra.mxu0 0.0
    %301 = vmatprep.subr.mxu0 0.0
    %302 = vmatpush1.msra.mxu0 0.0
    %303 = vmatprep.subr.mxu0 0.0
    %v304 = vand.u32 %v36, 4294901760
    %305 = vmatpush1.msra.mxu0 %v304
    %306 = vmatprep.subr.mxu0 0.0
    %v307 = vand.u32 %v35, 4294901760
    %308 = vmatpush1.msra.mxu0 %v307
    %309 = vmatprep.subr.mxu0 0.0
    %310 = vmatpush2.msra.mxu0 0.0
    %311 = vmatprep.subr.mxu0 0.0
    %312 = vmatpush2.msra.mxu0 0.0
    %313 = vmatprep.subr.mxu0 0.0
    %314 = vmatpush2.msra.mxu0 0.0
    %315 = vmatprep.subr.mxu0 0.0
    %316 = vmatpush2.msra.mxu0 0.0
    %317 = vmatprep.subr.mxu0 0.0
    %318 = vmatpush2.msra.mxu0 0.0
    %319 = vmatprep.subr.mxu0 0.0
    %320 = vmatpush2.msra.mxu0 0.0
    %321 = vmatprep.subr.mxu0 0.0
    %322 = vmatpush2.msra.mxu0 0.0
    %323 = vmatprep.subr.mxu0 0.0
    %324 = vmatpush2.msra.mxu0 0.0
    %325 = vmatprep.subr.mxu0 0.0
    %326 = vmatpush2.msra.mxu0 0.0
    %327 = vmatprep.subr.mxu0 0.0
    %328 = vmatpush2.msra.mxu0 0.0
    %329 = vmatprep.subr.mxu0 0.0
    %330 = vmatpush2.msra.mxu0 0.0
    %331 = vmatprep.subr.mxu0 0.0
    %332 = vmatpush2.msra.mxu0 0.0
    %333 = vmatprep.subr.mxu0 0.0
    %334 = vmatpush2.msra.mxu0 0.0
    %335 = vmatprep.subr.mxu0 0.0
    %336 = vmatpush2.msra.mxu0 0.0
    %337 = vmatprep.subr.mxu0 0.0
    %338 = vmatpush2.msra.mxu0 0.0
    %339 = vmatprep.subr.mxu0 0.0
    %340 = vmatpush2.msra.mxu0 0.0
    %341 = vmatprep.mubr.f32.mxu0 0.0
    %v342 = vand.u32 %v39, 4294901760
    %v343 = vsub.f32 %v39, %v342
    %v344 = vand.u32 %v343, 4294901760
    %345 = vmatmul.mubr.f32.gmra.mxu0 %v344
    %v346 = vpop.f32.mrf.mxu0
    %v347 = vadd.f32 %v272, %v346
    %v348 = vpop.f32.mrf.mxu0
    %349 = vdwg.mxu0
    %350 = vmatprep.subr.mxu0 0.0
    %351 = vmatpush1.msra.mxu0 0.0
    %352 = vmatprep.subr.mxu0 0.0
    %353 = vmatpush1.msra.mxu0 0.0
    %354 = vmatprep.subr.mxu0 0.0
    %355 = vmatpush1.msra.mxu0 0.0
    %356 = vmatprep.subr.mxu0 0.0
    %357 = vmatpush1.msra.mxu0 0.0
    %358 = vmatprep.subr.mxu0 0.0
    %359 = vmatpush1.msra.mxu0 0.0
    %360 = vmatprep.subr.mxu0 0.0
    %361 = vmatpush1.msra.mxu0 0.0
    %362 = vmatprep.subr.mxu0 0.0
    %363 = vmatpush1.msra.mxu0 0.0
    %364 = vmatprep.subr.mxu0 0.0
    %365 = vmatpush1.msra.mxu0 0.0
    %366 = vmatprep.subr.mxu0 0.0
    %367 = vmatpush1.msra.mxu0 0.0
    %368 = vmatprep.subr.mxu0 0.0
    %369 = vmatpush1.msra.mxu0 0.0
    %370 = vmatprep.subr.mxu0 0.0
    %371 = vmatpush1.msra.mxu0 0.0
    %372 = vmatprep.subr.mxu0 0.0
    %373 = vmatpush1.msra.mxu0 0.0
    %374 = vmatprep.subr.mxu0 0.0
    %375 = vmatpush1.msra.mxu0 0.0
    %376 = vmatprep.subr.mxu0 0.0
    %377 = vmatpush1.msra.mxu0 0.0
    %378 = vmatprep.subr.mxu0 0.0
    %v379 = vand.u32 %v36, 4294901760
    %v380 = vsub.f32 %v36, %v379
    %v381 = vand.u32 %v380, 4294901760
    %382 = vmatpush1.msra.mxu0 %v381
    %383 = vmatprep.subr.mxu0 0.0
    %v384 = vand.u32 %v35, 4294901760
    %v385 = vsub.f32 %v35, %v384
    %v386 = vand.u32 %v385, 4294901760
    %387 = vmatpush1.msra.mxu0 %v386
    %388 = vmatprep.subr.mxu0 0.0
    %389 = vmatpush2.msra.mxu0 0.0
    %390 = vmatprep.subr.mxu0 0.0
    %391 = vmatpush2.msra.mxu0 0.0
    %392 = vmatprep.subr.mxu0 0.0
    %393 = vmatpush2.msra.mxu0 0.0
    %394 = vmatprep.subr.mxu0 0.0
    %395 = vmatpush2.msra.mxu0 0.0
    %396 = vmatprep.subr.mxu0 0.0
    %397 = vmatpush2.msra.mxu0 0.0
    %398 = vmatprep.subr.mxu0 0.0
    %399 = vmatpush2.msra.mxu0 0.0
    %400 = vmatprep.subr.mxu0 0.0
    %401 = vmatpush2.msra.mxu0 0.0
    %402 = vmatprep.subr.mxu0 0.0
    %403 = vmatpush2.msra.mxu0 0.0
    %404 = vmatprep.subr.mxu0 0.0
    %405 = vmatpush2.msra.mxu0 0.0
    %406 = vmatprep.subr.mxu0 0.0
    %407 = vmatpush2.msra.mxu0 0.0
    %408 = vmatprep.subr.mxu0 0.0
    %409 = vmatpush2.msra.mxu0 0.0
    %410 = vmatprep.subr.mxu0 0.0
    %411 = vmatpush2.msra.mxu0 0.0
    %412 = vmatprep.subr.mxu0 0.0
    %413 = vmatpush2.msra.mxu0 0.0
    %414 = vmatprep.subr.mxu0 0.0
    %415 = vmatpush2.msra.mxu0 0.0
    %416 = vmatprep.subr.mxu0 0.0
    %417 = vmatpush2.msra.mxu0 0.0
    %418 = vmatprep.subr.mxu0 0.0
    %419 = vmatpush2.msra.mxu0 0.0
    %420 = vmatprep.mubr.f32.mxu0 0.0
    %v421 = vand.u32 %v39, 4294901760
    %422 = vmatmul.mubr.f32.gmra.mxu0 %v421
    %v423 = vpop.f32.mrf.mxu0
    %v424 = vadd.f32 %v347, %v423
    %v425 = vpop.f32.mrf.mxu0
    %426 = vdwg.mxu0
    %427 = vmatprep.subr.mxu0 0.0
    %428 = vmatpush1.msra.mxu0 0.0
    %429 = vmatprep.subr.mxu0 0.0
    %430 = vmatpush1.msra.mxu0 0.0
    %431 = vmatprep.subr.mxu0 0.0
    %432 = vmatpush1.msra.mxu0 0.0
    %433 = vmatprep.subr.mxu0 0.0
    %434 = vmatpush1.msra.mxu0 0.0
    %435 = vmatprep.subr.mxu0 0.0
    %436 = vmatpush1.msra.mxu0 0.0
    %437 = vmatprep.subr.mxu0 0.0
    %438 = vmatpush1.msra.mxu0 0.0
    %439 = vmatprep.subr.mxu0 0.0
    %440 = vmatpush1.msra.mxu0 0.0
    %441 = vmatprep.subr.mxu0 0.0
    %442 = vmatpush1.msra.mxu0 0.0
    %443 = vmatprep.subr.mxu0 0.0
    %444 = vmatpush1.msra.mxu0 0.0
    %445 = vmatprep.subr.mxu0 0.0
    %446 = vmatpush1.msra.mxu0 0.0
    %447 = vmatprep.subr.mxu0 0.0
    %448 = vmatpush1.msra.mxu0 0.0
    %449 = vmatprep.subr.mxu0 0.0
    %450 = vmatpush1.msra.mxu0 0.0
    %451 = vmatprep.subr.mxu0 0.0
    %452 = vmatpush1.msra.mxu0 0.0
    %453 = vmatprep.subr.mxu0 0.0
    %454 = vmatpush1.msra.mxu0 0.0
    %455 = vmatprep.subr.mxu0 0.0
    %v456 = vand.u32 %v36, 4294901760
    %457 = vmatpush1.msra.mxu0 %v456
    %458 = vmatprep.subr.mxu0 0.0
    %v459 = vand.u32 %v35, 4294901760
    %460 = vmatpush1.msra.mxu0 %v459
    %461 = vmatprep.subr.mxu0 0.0
    %462 = vmatpush2.msra.mxu0 0.0
    %463 = vmatprep.subr.mxu0 0.0
    %464 = vmatpush2.msra.mxu0 0.0
    %465 = vmatprep.subr.mxu0 0.0
    %466 = vmatpush2.msra.mxu0 0.0
    %467 = vmatprep.subr.mxu0 0.0
    %468 = vmatpush2.msra.mxu0 0.0
    %469 = vmatprep.subr.mxu0 0.0
    %470 = vmatpush2.msra.mxu0 0.0
    %471 = vmatprep.subr.mxu0 0.0
    %472 = vmatpush2.msra.mxu0 0.0
    %473 = vmatprep.subr.mxu0 0.0
    %474 = vmatpush2.msra.mxu0 0.0
    %475 = vmatprep.subr.mxu0 0.0
    %476 = vmatpush2.msra.mxu0 0.0
    %477 = vmatprep.subr.mxu0 0.0
    %478 = vmatpush2.msra.mxu0 0.0
    %479 = vmatprep.subr.mxu0 0.0
    %480 = vmatpush2.msra.mxu0 0.0
    %481 = vmatprep.subr.mxu0 0.0
    %482 = vmatpush2.msra.mxu0 0.0
    %483 = vmatprep.subr.mxu0 0.0
    %484 = vmatpush2.msra.mxu0 0.0
    %485 = vmatprep.subr.mxu0 0.0
    %486 = vmatpush2.msra.mxu0 0.0
    %487 = vmatprep.subr.mxu0 0.0
    %488 = vmatpush2.msra.mxu0 0.0
    %489 = vmatprep.subr.mxu0 0.0
    %490 = vmatpush2.msra.mxu0 0.0
    %491 = vmatprep.subr.mxu0 0.0
    %492 = vmatpush2.msra.mxu0 0.0
    %493 = vmatprep.mubr.f32.mxu0 0.0
    %v494 = vand.u32 %v39, 4294901760
    %495 = vmatmul.mubr.f32.gmra.mxu0 %v494
    %v496 = vpop.f32.mrf.mxu0
    %v497 = vadd.f32 %v424, %v496
    %v498 = vpop.f32.mrf.mxu0
    %499 = vdwg.mxu0
    %500 = vst [vmem:[#allocation5] sm:$0xff] %v497
    // Predicated region
    $region14: #{tpu_custom_call.1} parent=1 // pred_check
      _
    $region15: #{tpu_custom_call.1} parent=1 // pred_check_branch
      %502 = sbr.rel (0) target = $region17
    $region16: #{tpu_custom_call.1} parent=1 // pred_region
      %s504 = ssub.s32 128, 128
      %505 = vsyncadd [#allocation4], %s504
      %s507 = sshll.u32 [#allocation5], 4
      %s508 = int_to_ptr.vmem [resolvable:$true] %s507
      %510 = dma.vmem_to_hbm [thread:$0]  %s508, 128, %s2, [#allocation4]
    $region17: #{tpu_custom_call.1} parent=1 // pred_fallthru
      _
    // Predicated region
    $region18: #{tpu_custom_call.1} parent=1 // pred_check
      _
    $region19: #{tpu_custom_call.1} parent=1 // pred_check_branch
      %512 = sbr.rel (0) target = $region21
    $region20: #{tpu_custom_call.1} parent=1 // pred_region
      %513 = dma.done [#allocation4], 128
    $region21: #{tpu_custom_call.1} parent=1 // pred_fallthru
      _
    %514 = vsyncpa [#allocation3], 1
    %515 = vsyncpa [#allocation4], 1

</llo_original>
